<compile_context>
chip_gen: v7x
topology: tpu7x:2x2x1
jax: 0.10.0
libtpu: 0.0.40
codegen_flags: <defaults>
</compile_context>

<pallas_src>
import functools

import jax
import jax.numpy as jnp
from jax import lax
from jax.experimental import pallas as pl
from jax.experimental.pallas import tpu as pltpu

_EPS = 1e-5


def _conv_block_kernel(x_ref, w_ref, b_ref, g_ref, be_ref, a_ref, coord_ref, o_ref,
                       *, ksize, H, W, batch_norm, activation):
    """Fused ConvBlock.

    x_ref:     (N, Cin, H*W)      f32  flattened images (lane axis = H*W, dense)
    w_ref:     (Cout, k*k*Cin)    f32  weights packed (kh, kw, ci) column-major
    b_ref:     (Cout, 1)          f32  conv bias
    g_ref:     (Cout, 1)          f32  BN gamma
    be_ref:    (Cout, 1)          f32  BN beta
    a_ref:     (1,)               f32  PReLU slope (SMEM)
    coord_ref: (2, H*W)           i32  per-pixel (row, col) -> in-kernel halo masks
    o_ref:     (N, Cout, H*W)     f32  output (lane-dense stores)
    """
    N, Cin, HW = x_ref.shape
    Cout = o_ref.shape[1]
    pad = ksize // 2
    ext = pad * (W + 1)          # zero extension so every tap is a static in-bounds slice

    coords = coord_ref[...]
    row = coords[0:1, :]         # (1, HW)
    col = coords[1:2, :]         # (1, HW)

    # Border-validity mask per tap (replaces any padded copy of the activations).
    taps = []
    for dh in range(-pad, pad + 1):
        for dw in range(-pad, pad + 1):
            valid = ((row + dh >= 0) & (row + dh < H) &
                     (col + dw >= 0) & (col + dw < W))          # (1, HW) bool
            taps.append((dh, dw, valid))

    # Build the im2col matrix P (k*k*Cin, N*HW): each tap is a static lane-offset
    # slice of the zero-extended flat image, masked at the borders.
    zext = jnp.zeros((Cin, ext), jnp.float32)
    patches = []
    for n in range(N):
        xn = x_ref[n].astype(jnp.float32)                        # (Cin, HW)
        xe = jnp.concatenate([zext, xn, zext], axis=1)           # (Cin, HW + 2*ext)
        slabs = []
        for dh, dw, valid in taps:
            start = ext + dh * W + dw                            # static, >= 0
            slabs.append(jnp.where(valid, xe[:, start:start + HW], 0.0))
        patches.append(jnp.concatenate(slabs, axis=0))           # (k*k*Cin, HW)
    P = jnp.concatenate(patches, axis=1) if N > 1 else patches[0]   # (k*k*Cin, N*HW)

    # Single MXU push: (Cout, K) @ (K, N*HW) -> lane-dense (Cout, N*HW).
    wmat = w_ref[...].astype(jnp.float32)
    acc = jnp.dot(wmat, P, preferred_element_type=jnp.float32)
    acc = acc + b_ref[...].astype(jnp.float32)                   # (Cout, 1) broadcast

    if batch_norm:
        # Training-mode BatchNorm2d: per-channel stats over the full N*H*W axis
        # (biased variance).  Lane reductions on the XLU; two-pass for stability.
        mean = jnp.mean(acc, axis=1, keepdims=True)              # (Cout, 1)
        cen = acc - mean
        var = jnp.mean(cen * cen, axis=1, keepdims=True)
        acc = cen * lax.rsqrt(var + _EPS)
        acc = acc * g_ref[...].astype(jnp.float32) + be_ref[...].astype(jnp.float32)

    if activation == "prelu":
        alpha = a_ref[0]                                         # scalar from SMEM
        acc = jnp.where(acc >= 0.0, acc, alpha * acc)
    elif activation == "leakyrelu":
        acc = jnp.where(acc >= 0.0, acc, 0.2 * acc)
    elif activation == "tanh":
        acc = jnp.tanh(acc)

    # Lane-dense output stores: (Cout, 256) per image, 128-aligned lane slices.
    for n in range(N):
        o_ref[n, :, :] = acc[:, n * HW:(n + 1) * HW].astype(o_ref.dtype)


def _vmem_spec():
    return pl.BlockSpec(memory_space=pltpu.MemorySpace.VMEM)


@functools.partial(jax.jit,
                   static_argnames=("kernel_size", "stride", "batch_norm", "activation"))
def conv_block_forward(x, params, *, kernel_size=3, stride=1, batch_norm=True,
                       activation="prelu"):
    """ConvBlock forward.  x: (N, Cin, H, W) f32 (NCHW) -> (N, Cout, H, W) f32."""
    if stride != 1:
        # TODO(synk): stride > 1 not implemented in the Pallas kernel
        # (the module default and the test configuration use stride=1).
        raise NotImplementedError("stride > 1 not supported by this kernel")

    N, Cin, H, W = x.shape
    w = params["w"]
    Cout = w.shape[0]
    k = kernel_size
    assert w.shape == (Cout, Cin, k, k)
    HW = H * W

    # Tiny one-time parameter packing (weights are negligible vs activations).
    wmat = jnp.transpose(w, (0, 2, 3, 1)).reshape(Cout, k * k * Cin).astype(jnp.float32)
    bcol = params["b"].reshape(Cout, 1).astype(jnp.float32)
    gcol = params.get("gamma", jnp.ones((Cout,), jnp.float32)).reshape(Cout, 1).astype(jnp.float32)
    becol = params.get("beta", jnp.zeros((Cout,), jnp.float32)).reshape(Cout, 1).astype(jnp.float32)
    alpha = params.get("alpha", jnp.zeros((1,), jnp.float32)).reshape(1).astype(jnp.float32)

    # Per-pixel (row, col) planes used for in-kernel halo masking (no padded activation
    # copy in HBM, no in-kernel integer div/mod).
    row_ids = jnp.repeat(jnp.arange(H, dtype=jnp.int32), W)
    col_ids = jnp.tile(jnp.arange(W, dtype=jnp.int32), H)
    coords = jnp.stack([row_ids, col_ids], axis=0)               # (2, HW) int32

    x_flat = x.reshape(N, Cin, HW).astype(jnp.float32)           # free row-major reshape

    kernel = functools.partial(_conv_block_kernel, ksize=k, H=H, W=W,
                               batch_norm=batch_norm, activation=activation)
    out = pl.pallas_call(
        kernel,
        out_shape=jax.ShapeDtypeStruct((N, Cout, HW), jnp.float32),
        in_specs=[
            _vmem_spec(),                                        # x
            _vmem_spec(),                                        # packed weights
            _vmem_spec(),                                        # bias
            _vmem_spec(),                                        # gamma
            _vmem_spec(),                                        # beta
            pl.BlockSpec(memory_space=pltpu.MemorySpace.SMEM),   # PReLU slope (scalar)
            _vmem_spec(),                                        # pixel coordinates
        ],
        out_specs=_vmem_spec(),
        compiler_params=pltpu.CompilerParams(vmem_limit_bytes=32 * 1024 * 1024),
    )(x_flat, wmat, bcol, gcol, becol, alpha, coords)

    return out.reshape(N, Cout, H, W)                            # free row-major reshape


def init_conv_block_params(key, in_channels, out_channels, kernel_size):
    """Deterministic synthetic init matching nn.Conv2d / BatchNorm2d / PReLU shapes."""
    ks = jax.random.split(key, 4)
    fan_in = in_channels * kernel_size * kernel_size
    bound = 1.0 / (fan_in ** 0.5)
    w = jax.random.uniform(ks[0], (out_channels, in_channels, kernel_size, kernel_size),
                           jnp.float32, -bound, bound)
    b = jax.random.uniform(ks[1], (out_channels,), jnp.float32, -bound, bound)
    gamma = 1.0 + 0.1 * jax.random.normal(ks[2], (out_channels,), jnp.float32)
    beta = 0.1 * jax.random.normal(ks[3], (out_channels,), jnp.float32)
    alpha = jnp.full((1,), 0.25, jnp.float32)                    # nn.PReLU() default
    return dict(w=w, b=b, gamma=gamma, beta=beta, alpha=alpha)


def conv_block_reference(x, params, *, kernel_size=3, stride=1, batch_norm=True,
                         activation="prelu"):
    """Pure-JAX reference (same semantics as the PyTorch module in training mode)."""
    k = kernel_size
    pad = k // 2
    y = lax.conv_general_dilated(
        x, params["w"], window_strides=(stride, stride),
        padding=((pad, pad), (pad, pad)),
        dimension_numbers=("NCHW", "OIHW", "NCHW"),
        precision=lax.Precision.HIGHEST)
    y = y + params["b"].reshape(1, -1, 1, 1)
    if batch_norm:
        mean = jnp.mean(y, axis=(0, 2, 3), keepdims=True)
        var = jnp.mean((y - mean) ** 2, axis=(0, 2, 3), keepdims=True)
        y = (y - mean) * lax.rsqrt(var + _EPS)
        y = y * params["gamma"].reshape(1, -1, 1, 1) + params["beta"].reshape(1, -1, 1, 1)
    if activation == "prelu":
        y = jnp.where(y >= 0, y, params["alpha"][0] * y)
    elif activation == "leakyrelu":
        y = jnp.where(y >= 0, y, 0.2 * y)
    elif activation == "tanh":
        y = jnp.tanh(y)
    return y


if __name__ == "__main__":
    key = jax.random.PRNGKey(0)
    k_x, k_p = jax.random.split(key)

    N, C_IN, C_OUT, H, W, K = 2, 4, 4, 16, 16, 3
    x = jax.random.normal(k_x, (N, C_IN, H, W), jnp.float32)
    params = init_conv_block_params(k_p, C_IN, C_OUT, K)

    out = conv_block_forward(x, params, kernel_size=K, batch_norm=True,
                             activation="prelu")
    out = jax.block_until_ready(out)
    assert out.shape == (N, C_OUT, H, W) and out.dtype == jnp.float32

    ref = jax.block_until_ready(
        conv_block_reference(x, params, kernel_size=K, batch_norm=True,
                             activation="prelu"))
    max_err = float(jnp.max(jnp.abs(out - ref)))
    assert max_err < 5e-2, f"mismatch vs reference: {max_err}"

    print("KERNEL_OK")
</pallas_src>

<mosaic_0001>
module attributes {stable_mosaic.version = 11 : i64} {
  func.func @_conv_block_kernel(%arg0: memref<2x4x256xf32, #tpu.memory_space<vmem>>, %arg1: memref<4x36xf32, #tpu.memory_space<vmem>>, %arg2: memref<4x1xf32, #tpu.memory_space<vmem>>, %arg3: memref<4x1xf32, #tpu.memory_space<vmem>>, %arg4: memref<4x1xf32, #tpu.memory_space<vmem>>, %arg5: memref<1xf32, #tpu.memory_space<smem>>, %arg6: memref<2x256xi32, #tpu.memory_space<vmem>>, %arg7: memref<2x4x256xf32, #tpu.memory_space<vmem>>) attributes {dimension_semantics = [], scalar_prefetch = 0 : i64, scratch_operands = 0 : i64, tpu.core_type = #tpu.core_type<tc>} {
    %c0 = arith.constant 0 : index
    %c0_0 = arith.constant 0 : index
    %0 = vector.load %arg6[%c0, %c0_0] : memref<2x256xi32, #tpu.memory_space<vmem>>, vector<2x256xi32>
    %1 = vector.extract_strided_slice %0 {offsets = [0, 0], sizes = [1, 256], strides = [1, 1]} : vector<2x256xi32> to vector<1x256xi32>
    %2 = vector.extract_strided_slice %0 {offsets = [1, 0], sizes = [1, 256], strides = [1, 1]} : vector<2x256xi32> to vector<1x256xi32>
    %c-1_i32 = arith.constant -1 : i32
    %3 = vector.broadcast %c-1_i32 : i32 to vector<1x256xi32>
    %4 = arith.addi %1, %3 : vector<1x256xi32>
    %c0_i32 = arith.constant 0 : i32
    %5 = vector.broadcast %c0_i32 : i32 to vector<1x256xi32>
    %6 = arith.cmpi sge, %4, %5 : vector<1x256xi32>
    %c-1_i32_1 = arith.constant -1 : i32
    %7 = vector.broadcast %c-1_i32_1 : i32 to vector<1x256xi32>
    %8 = arith.addi %1, %7 : vector<1x256xi32>
    %c16_i32 = arith.constant 16 : i32
    %9 = vector.broadcast %c16_i32 : i32 to vector<1x256xi32>
    %10 = arith.cmpi slt, %8, %9 : vector<1x256xi32>
    %11 = arith.andi %6, %10 : vector<1x256xi1>
    %c-1_i32_2 = arith.constant -1 : i32
    %12 = vector.broadcast %c-1_i32_2 : i32 to vector<1x256xi32>
    %13 = arith.addi %2, %12 : vector<1x256xi32>
    %c0_i32_3 = arith.constant 0 : i32
    %14 = vector.broadcast %c0_i32_3 : i32 to vector<1x256xi32>
    %15 = arith.cmpi sge, %13, %14 : vector<1x256xi32>
    %16 = arith.andi %11, %15 : vector<1x256xi1>
    %c-1_i32_4 = arith.constant -1 : i32
    %17 = vector.broadcast %c-1_i32_4 : i32 to vector<1x256xi32>
    %18 = arith.addi %2, %17 : vector<1x256xi32>
    %c16_i32_5 = arith.constant 16 : i32
    %19 = vector.broadcast %c16_i32_5 : i32 to vector<1x256xi32>
    %20 = arith.cmpi slt, %18, %19 : vector<1x256xi32>
    %21 = arith.andi %16, %20 : vector<1x256xi1>
    %c-1_i32_6 = arith.constant -1 : i32
    %22 = vector.broadcast %c-1_i32_6 : i32 to vector<1x256xi32>
    %23 = arith.addi %1, %22 : vector<1x256xi32>
    %c0_i32_7 = arith.constant 0 : i32
    %24 = vector.broadcast %c0_i32_7 : i32 to vector<1x256xi32>
    %25 = arith.cmpi sge, %23, %24 : vector<1x256xi32>
    %c-1_i32_8 = arith.constant -1 : i32
    %26 = vector.broadcast %c-1_i32_8 : i32 to vector<1x256xi32>
    %27 = arith.addi %1, %26 : vector<1x256xi32>
    %c16_i32_9 = arith.constant 16 : i32
    %28 = vector.broadcast %c16_i32_9 : i32 to vector<1x256xi32>
    %29 = arith.cmpi slt, %27, %28 : vector<1x256xi32>
    %30 = arith.andi %25, %29 : vector<1x256xi1>
    %c0_i32_10 = arith.constant 0 : i32
    %31 = vector.broadcast %c0_i32_10 : i32 to vector<1x256xi32>
    %32 = arith.addi %2, %31 : vector<1x256xi32>
    %c0_i32_11 = arith.constant 0 : i32
    %33 = vector.broadcast %c0_i32_11 : i32 to vector<1x256xi32>
    %34 = arith.cmpi sge, %32, %33 : vector<1x256xi32>
    %35 = arith.andi %30, %34 : vector<1x256xi1>
    %c0_i32_12 = arith.constant 0 : i32
    %36 = vector.broadcast %c0_i32_12 : i32 to vector<1x256xi32>
    %37 = arith.addi %2, %36 : vector<1x256xi32>
    %c16_i32_13 = arith.constant 16 : i32
    %38 = vector.broadcast %c16_i32_13 : i32 to vector<1x256xi32>
    %39 = arith.cmpi slt, %37, %38 : vector<1x256xi32>
    %40 = arith.andi %35, %39 : vector<1x256xi1>
    %c-1_i32_14 = arith.constant -1 : i32
    %41 = vector.broadcast %c-1_i32_14 : i32 to vector<1x256xi32>
    %42 = arith.addi %1, %41 : vector<1x256xi32>
    %c0_i32_15 = arith.constant 0 : i32
    %43 = vector.broadcast %c0_i32_15 : i32 to vector<1x256xi32>
    %44 = arith.cmpi sge, %42, %43 : vector<1x256xi32>
    %c-1_i32_16 = arith.constant -1 : i32
    %45 = vector.broadcast %c-1_i32_16 : i32 to vector<1x256xi32>
    %46 = arith.addi %1, %45 : vector<1x256xi32>
    %c16_i32_17 = arith.constant 16 : i32
    %47 = vector.broadcast %c16_i32_17 : i32 to vector<1x256xi32>
    %48 = arith.cmpi slt, %46, %47 : vector<1x256xi32>
    %49 = arith.andi %44, %48 : vector<1x256xi1>
    %c1_i32 = arith.constant 1 : i32
    %50 = vector.broadcast %c1_i32 : i32 to vector<1x256xi32>
    %51 = arith.addi %2, %50 : vector<1x256xi32>
    %c0_i32_18 = arith.constant 0 : i32
    %52 = vector.broadcast %c0_i32_18 : i32 to vector<1x256xi32>
    %53 = arith.cmpi sge, %51, %52 : vector<1x256xi32>
    %54 = arith.andi %49, %53 : vector<1x256xi1>
    %c1_i32_19 = arith.constant 1 : i32
    %55 = vector.broadcast %c1_i32_19 : i32 to vector<1x256xi32>
    %56 = arith.addi %2, %55 : vector<1x256xi32>
    %c16_i32_20 = arith.constant 16 : i32
    %57 = vector.broadcast %c16_i32_20 : i32 to vector<1x256xi32>
    %58 = arith.cmpi slt, %56, %57 : vector<1x256xi32>
    %59 = arith.andi %54, %58 : vector<1x256xi1>
    %c0_i32_21 = arith.constant 0 : i32
    %60 = vector.broadcast %c0_i32_21 : i32 to vector<1x256xi32>
    %61 = arith.addi %1, %60 : vector<1x256xi32>
    %c0_i32_22 = arith.constant 0 : i32
    %62 = vector.broadcast %c0_i32_22 : i32 to vector<1x256xi32>
    %63 = arith.cmpi sge, %61, %62 : vector<1x256xi32>
    %c0_i32_23 = arith.constant 0 : i32
    %64 = vector.broadcast %c0_i32_23 : i32 to vector<1x256xi32>
    %65 = arith.addi %1, %64 : vector<1x256xi32>
    %c16_i32_24 = arith.constant 16 : i32
    %66 = vector.broadcast %c16_i32_24 : i32 to vector<1x256xi32>
    %67 = arith.cmpi slt, %65, %66 : vector<1x256xi32>
    %68 = arith.andi %63, %67 : vector<1x256xi1>
    %c-1_i32_25 = arith.constant -1 : i32
    %69 = vector.broadcast %c-1_i32_25 : i32 to vector<1x256xi32>
    %70 = arith.addi %2, %69 : vector<1x256xi32>
    %c0_i32_26 = arith.constant 0 : i32
    %71 = vector.broadcast %c0_i32_26 : i32 to vector<1x256xi32>
    %72 = arith.cmpi sge, %70, %71 : vector<1x256xi32>
    %73 = arith.andi %68, %72 : vector<1x256xi1>
    %c-1_i32_27 = arith.constant -1 : i32
    %74 = vector.broadcast %c-1_i32_27 : i32 to vector<1x256xi32>
    %75 = arith.addi %2, %74 : vector<1x256xi32>
    %c16_i32_28 = arith.constant 16 : i32
    %76 = vector.broadcast %c16_i32_28 : i32 to vector<1x256xi32>
    %77 = arith.cmpi slt, %75, %76 : vector<1x256xi32>
    %78 = arith.andi %73, %77 : vector<1x256xi1>
    %c0_i32_29 = arith.constant 0 : i32
    %79 = vector.broadcast %c0_i32_29 : i32 to vector<1x256xi32>
    %80 = arith.addi %1, %79 : vector<1x256xi32>
    %c0_i32_30 = arith.constant 0 : i32
    %81 = vector.broadcast %c0_i32_30 : i32 to vector<1x256xi32>
    %82 = arith.cmpi sge, %80, %81 : vector<1x256xi32>
    %c0_i32_31 = arith.constant 0 : i32
    %83 = vector.broadcast %c0_i32_31 : i32 to vector<1x256xi32>
    %84 = arith.addi %1, %83 : vector<1x256xi32>
    %c16_i32_32 = arith.constant 16 : i32
    %85 = vector.broadcast %c16_i32_32 : i32 to vector<1x256xi32>
    %86 = arith.cmpi slt, %84, %85 : vector<1x256xi32>
    %87 = arith.andi %82, %86 : vector<1x256xi1>
    %c0_i32_33 = arith.constant 0 : i32
    %88 = vector.broadcast %c0_i32_33 : i32 to vector<1x256xi32>
    %89 = arith.addi %2, %88 : vector<1x256xi32>
    %c0_i32_34 = arith.constant 0 : i32
    %90 = vector.broadcast %c0_i32_34 : i32 to vector<1x256xi32>
    %91 = arith.cmpi sge, %89, %90 : vector<1x256xi32>
    %92 = arith.andi %87, %91 : vector<1x256xi1>
    %c0_i32_35 = arith.constant 0 : i32
    %93 = vector.broadcast %c0_i32_35 : i32 to vector<1x256xi32>
    %94 = arith.addi %2, %93 : vector<1x256xi32>
    %c16_i32_36 = arith.constant 16 : i32
    %95 = vector.broadcast %c16_i32_36 : i32 to vector<1x256xi32>
    %96 = arith.cmpi slt, %94, %95 : vector<1x256xi32>
    %97 = arith.andi %92, %96 : vector<1x256xi1>
    %c0_i32_37 = arith.constant 0 : i32
    %98 = vector.broadcast %c0_i32_37 : i32 to vector<1x256xi32>
    %99 = arith.addi %1, %98 : vector<1x256xi32>
    %c0_i32_38 = arith.constant 0 : i32
    %100 = vector.broadcast %c0_i32_38 : i32 to vector<1x256xi32>
    %101 = arith.cmpi sge, %99, %100 : vector<1x256xi32>
    %c0_i32_39 = arith.constant 0 : i32
    %102 = vector.broadcast %c0_i32_39 : i32 to vector<1x256xi32>
    %103 = arith.addi %1, %102 : vector<1x256xi32>
    %c16_i32_40 = arith.constant 16 : i32
    %104 = vector.broadcast %c16_i32_40 : i32 to vector<1x256xi32>
    %105 = arith.cmpi slt, %103, %104 : vector<1x256xi32>
    %106 = arith.andi %101, %105 : vector<1x256xi1>
    %c1_i32_41 = arith.constant 1 : i32
    %107 = vector.broadcast %c1_i32_41 : i32 to vector<1x256xi32>
    %108 = arith.addi %2, %107 : vector<1x256xi32>
    %c0_i32_42 = arith.constant 0 : i32
    %109 = vector.broadcast %c0_i32_42 : i32 to vector<1x256xi32>
    %110 = arith.cmpi sge, %108, %109 : vector<1x256xi32>
    %111 = arith.andi %106, %110 : vector<1x256xi1>
    %c1_i32_43 = arith.constant 1 : i32
    %112 = vector.broadcast %c1_i32_43 : i32 to vector<1x256xi32>
    %113 = arith.addi %2, %112 : vector<1x256xi32>
    %c16_i32_44 = arith.constant 16 : i32
    %114 = vector.broadcast %c16_i32_44 : i32 to vector<1x256xi32>
    %115 = arith.cmpi slt, %113, %114 : vector<1x256xi32>
    %116 = arith.andi %111, %115 : vector<1x256xi1>
    %c1_i32_45 = arith.constant 1 : i32
    %117 = vector.broadcast %c1_i32_45 : i32 to vector<1x256xi32>
    %118 = arith.addi %1, %117 : vector<1x256xi32>
    %c0_i32_46 = arith.constant 0 : i32
    %119 = vector.broadcast %c0_i32_46 : i32 to vector<1x256xi32>
    %120 = arith.cmpi sge, %118, %119 : vector<1x256xi32>
    %c1_i32_47 = arith.constant 1 : i32
    %121 = vector.broadcast %c1_i32_47 : i32 to vector<1x256xi32>
    %122 = arith.addi %1, %121 : vector<1x256xi32>
    %c16_i32_48 = arith.constant 16 : i32
    %123 = vector.broadcast %c16_i32_48 : i32 to vector<1x256xi32>
    %124 = arith.cmpi slt, %122, %123 : vector<1x256xi32>
    %125 = arith.andi %120, %124 : vector<1x256xi1>
    %c-1_i32_49 = arith.constant -1 : i32
    %126 = vector.broadcast %c-1_i32_49 : i32 to vector<1x256xi32>
    %127 = arith.addi %2, %126 : vector<1x256xi32>
    %c0_i32_50 = arith.constant 0 : i32
    %128 = vector.broadcast %c0_i32_50 : i32 to vector<1x256xi32>
    %129 = arith.cmpi sge, %127, %128 : vector<1x256xi32>
    %130 = arith.andi %125, %129 : vector<1x256xi1>
    %c-1_i32_51 = arith.constant -1 : i32
    %131 = vector.broadcast %c-1_i32_51 : i32 to vector<1x256xi32>
    %132 = arith.addi %2, %131 : vector<1x256xi32>
    %c16_i32_52 = arith.constant 16 : i32
    %133 = vector.broadcast %c16_i32_52 : i32 to vector<1x256xi32>
    %134 = arith.cmpi slt, %132, %133 : vector<1x256xi32>
    %135 = arith.andi %130, %134 : vector<1x256xi1>
    %c1_i32_53 = arith.constant 1 : i32
    %136 = vector.broadcast %c1_i32_53 : i32 to vector<1x256xi32>
    %137 = arith.addi %1, %136 : vector<1x256xi32>
    %c0_i32_54 = arith.constant 0 : i32
    %138 = vector.broadcast %c0_i32_54 : i32 to vector<1x256xi32>
    %139 = arith.cmpi sge, %137, %138 : vector<1x256xi32>
    %c1_i32_55 = arith.constant 1 : i32
    %140 = vector.broadcast %c1_i32_55 : i32 to vector<1x256xi32>
    %141 = arith.addi %1, %140 : vector<1x256xi32>
    %c16_i32_56 = arith.constant 16 : i32
    %142 = vector.broadcast %c16_i32_56 : i32 to vector<1x256xi32>
    %143 = arith.cmpi slt, %141, %142 : vector<1x256xi32>
    %144 = arith.andi %139, %143 : vector<1x256xi1>
    %c0_i32_57 = arith.constant 0 : i32
    %145 = vector.broadcast %c0_i32_57 : i32 to vector<1x256xi32>
    %146 = arith.addi %2, %145 : vector<1x256xi32>
    %c0_i32_58 = arith.constant 0 : i32
    %147 = vector.broadcast %c0_i32_58 : i32 to vector<1x256xi32>
    %148 = arith.cmpi sge, %146, %147 : vector<1x256xi32>
    %149 = arith.andi %144, %148 : vector<1x256xi1>
    %c0_i32_59 = arith.constant 0 : i32
    %150 = vector.broadcast %c0_i32_59 : i32 to vector<1x256xi32>
    %151 = arith.addi %2, %150 : vector<1x256xi32>
    %c16_i32_60 = arith.constant 16 : i32
    %152 = vector.broadcast %c16_i32_60 : i32 to vector<1x256xi32>
    %153 = arith.cmpi slt, %151, %152 : vector<1x256xi32>
    %154 = arith.andi %149, %153 : vector<1x256xi1>
    %c1_i32_61 = arith.constant 1 : i32
    %155 = vector.broadcast %c1_i32_61 : i32 to vector<1x256xi32>
    %156 = arith.addi %1, %155 : vector<1x256xi32>
    %c0_i32_62 = arith.constant 0 : i32
    %157 = vector.broadcast %c0_i32_62 : i32 to vector<1x256xi32>
    %158 = arith.cmpi sge, %156, %157 : vector<1x256xi32>
    %c1_i32_63 = arith.constant 1 : i32
    %159 = vector.broadcast %c1_i32_63 : i32 to vector<1x256xi32>
    %160 = arith.addi %1, %159 : vector<1x256xi32>
    %c16_i32_64 = arith.constant 16 : i32
    %161 = vector.broadcast %c16_i32_64 : i32 to vector<1x256xi32>
    %162 = arith.cmpi slt, %160, %161 : vector<1x256xi32>
    %163 = arith.andi %158, %162 : vector<1x256xi1>
    %c1_i32_65 = arith.constant 1 : i32
    %164 = vector.broadcast %c1_i32_65 : i32 to vector<1x256xi32>
    %165 = arith.addi %2, %164 : vector<1x256xi32>
    %c0_i32_66 = arith.constant 0 : i32
    %166 = vector.broadcast %c0_i32_66 : i32 to vector<1x256xi32>
    %167 = arith.cmpi sge, %165, %166 : vector<1x256xi32>
    %168 = arith.andi %163, %167 : vector<1x256xi1>
    %c1_i32_67 = arith.constant 1 : i32
    %169 = vector.broadcast %c1_i32_67 : i32 to vector<1x256xi32>
    %170 = arith.addi %2, %169 : vector<1x256xi32>
    %c16_i32_68 = arith.constant 16 : i32
    %171 = vector.broadcast %c16_i32_68 : i32 to vector<1x256xi32>
    %172 = arith.cmpi slt, %170, %171 : vector<1x256xi32>
    %173 = arith.andi %168, %172 : vector<1x256xi1>
    %cst = arith.constant 0.000000e+00 : f32
    %174 = vector.broadcast %cst : f32 to vector<4x17xf32>
    %c0_69 = arith.constant 0 : index
    %c0_70 = arith.constant 0 : index
    %c0_71 = arith.constant 0 : index
    %175 = vector.load %arg0[%c0_69, %c0_70, %c0_71] : memref<2x4x256xf32, #tpu.memory_space<vmem>>, vector<1x4x256xf32>
    %176 = vector.shape_cast %175 : vector<1x4x256xf32> to vector<4x256xf32>
    %177 = tpu.concatenate %174, %176, %174 in 1 : vector<4x17xf32>, vector<4x256xf32>, vector<4x17xf32> -> vector<4x290xf32>
    %178 = vector.extract_strided_slice %177 {offsets = [0, 0], sizes = [4, 256], strides = [1, 1]} : vector<4x290xf32> to vector<4x256xf32>
    %cst_72 = arith.constant 0.000000e+00 : f32
    %179 = vector.shape_cast %21 : vector<1x256xi1> to vector<1x256xi1>
    %180 = vector.broadcast %179 : vector<1x256xi1> to vector<4x256xi1>
    %181 = vector.broadcast %cst_72 : f32 to vector<4x256xf32>
    %182 = arith.select %180, %178, %181 : vector<4x256xi1>, vector<4x256xf32>
    %183 = vector.extract_strided_slice %177 {offsets = [0, 1], sizes = [4, 256], strides = [1, 1]} : vector<4x290xf32> to vector<4x256xf32>
    %cst_73 = arith.constant 0.000000e+00 : f32
    %184 = vector.shape_cast %40 : vector<1x256xi1> to vector<1x256xi1>
    %185 = vector.broadcast %184 : vector<1x256xi1> to vector<4x256xi1>
    %186 = vector.broadcast %cst_73 : f32 to vector<4x256xf32>
    %187 = arith.select %185, %183, %186 : vector<4x256xi1>, vector<4x256xf32>
    %188 = vector.extract_strided_slice %177 {offsets = [0, 2], sizes = [4, 256], strides = [1, 1]} : vector<4x290xf32> to vector<4x256xf32>
    %cst_74 = arith.constant 0.000000e+00 : f32
    %189 = vector.shape_cast %59 : vector<1x256xi1> to vector<1x256xi1>
    %190 = vector.broadcast %189 : vector<1x256xi1> to vector<4x256xi1>
    %191 = vector.broadcast %cst_74 : f32 to vector<4x256xf32>
    %192 = arith.select %190, %188, %191 : vector<4x256xi1>, vector<4x256xf32>
    %193 = vector.extract_strided_slice %177 {offsets = [0, 16], sizes = [4, 256], strides = [1, 1]} : vector<4x290xf32> to vector<4x256xf32>
    %cst_75 = arith.constant 0.000000e+00 : f32
    %194 = vector.shape_cast %78 : vector<1x256xi1> to vector<1x256xi1>
    %195 = vector.broadcast %194 : vector<1x256xi1> to vector<4x256xi1>
    %196 = vector.broadcast %cst_75 : f32 to vector<4x256xf32>
    %197 = arith.select %195, %193, %196 : vector<4x256xi1>, vector<4x256xf32>
    %198 = vector.extract_strided_slice %177 {offsets = [0, 17], sizes = [4, 256], strides = [1, 1]} : vector<4x290xf32> to vector<4x256xf32>
    %cst_76 = arith.constant 0.000000e+00 : f32
    %199 = vector.shape_cast %97 : vector<1x256xi1> to vector<1x256xi1>
    %200 = vector.broadcast %199 : vector<1x256xi1> to vector<4x256xi1>
    %201 = vector.broadcast %cst_76 : f32 to vector<4x256xf32>
    %202 = arith.select %200, %198, %201 : vector<4x256xi1>, vector<4x256xf32>
    %203 = vector.extract_strided_slice %177 {offsets = [0, 18], sizes = [4, 256], strides = [1, 1]} : vector<4x290xf32> to vector<4x256xf32>
    %cst_77 = arith.constant 0.000000e+00 : f32
    %204 = vector.shape_cast %116 : vector<1x256xi1> to vector<1x256xi1>
    %205 = vector.broadcast %204 : vector<1x256xi1> to vector<4x256xi1>
    %206 = vector.broadcast %cst_77 : f32 to vector<4x256xf32>
    %207 = arith.select %205, %203, %206 : vector<4x256xi1>, vector<4x256xf32>
    %208 = vector.extract_strided_slice %177 {offsets = [0, 32], sizes = [4, 256], strides = [1, 1]} : vector<4x290xf32> to vector<4x256xf32>
    %cst_78 = arith.constant 0.000000e+00 : f32
    %209 = vector.shape_cast %135 : vector<1x256xi1> to vector<1x256xi1>
    %210 = vector.broadcast %209 : vector<1x256xi1> to vector<4x256xi1>
    %211 = vector.broadcast %cst_78 : f32 to vector<4x256xf32>
    %212 = arith.select %210, %208, %211 : vector<4x256xi1>, vector<4x256xf32>
    %213 = vector.extract_strided_slice %177 {offsets = [0, 33], sizes = [4, 256], strides = [1, 1]} : vector<4x290xf32> to vector<4x256xf32>
    %cst_79 = arith.constant 0.000000e+00 : f32
    %214 = vector.shape_cast %154 : vector<1x256xi1> to vector<1x256xi1>
    %215 = vector.broadcast %214 : vector<1x256xi1> to vector<4x256xi1>
    %216 = vector.broadcast %cst_79 : f32 to vector<4x256xf32>
    %217 = arith.select %215, %213, %216 : vector<4x256xi1>, vector<4x256xf32>
    %218 = vector.extract_strided_slice %177 {offsets = [0, 34], sizes = [4, 256], strides = [1, 1]} : vector<4x290xf32> to vector<4x256xf32>
    %cst_80 = arith.constant 0.000000e+00 : f32
    %219 = vector.shape_cast %173 : vector<1x256xi1> to vector<1x256xi1>
    %220 = vector.broadcast %219 : vector<1x256xi1> to vector<4x256xi1>
    %221 = vector.broadcast %cst_80 : f32 to vector<4x256xf32>
    %222 = arith.select %220, %218, %221 : vector<4x256xi1>, vector<4x256xf32>
    %223 = tpu.concatenate %182, %187, %192, %197, %202, %207, %212, %217, %222 in 0 : vector<4x256xf32>, vector<4x256xf32>, vector<4x256xf32>, vector<4x256xf32>, vector<4x256xf32>, vector<4x256xf32>, vector<4x256xf32>, vector<4x256xf32>, vector<4x256xf32> -> vector<36x256xf32>
    %c1 = arith.constant 1 : index
    %c0_81 = arith.constant 0 : index
    %c0_82 = arith.constant 0 : index
    %224 = vector.load %arg0[%c1, %c0_81, %c0_82] : memref<2x4x256xf32, #tpu.memory_space<vmem>>, vector<1x4x256xf32>
    %225 = vector.shape_cast %224 : vector<1x4x256xf32> to vector<4x256xf32>
    %226 = tpu.concatenate %174, %225, %174 in 1 : vector<4x17xf32>, vector<4x256xf32>, vector<4x17xf32> -> vector<4x290xf32>
    %227 = vector.extract_strided_slice %226 {offsets = [0, 0], sizes = [4, 256], strides = [1, 1]} : vector<4x290xf32> to vector<4x256xf32>
    %cst_83 = arith.constant 0.000000e+00 : f32
    %228 = vector.shape_cast %21 : vector<1x256xi1> to vector<1x256xi1>
    %229 = vector.broadcast %228 : vector<1x256xi1> to vector<4x256xi1>
    %230 = vector.broadcast %cst_83 : f32 to vector<4x256xf32>
    %231 = arith.select %229, %227, %230 : vector<4x256xi1>, vector<4x256xf32>
    %232 = vector.extract_strided_slice %226 {offsets = [0, 1], sizes = [4, 256], strides = [1, 1]} : vector<4x290xf32> to vector<4x256xf32>
    %cst_84 = arith.constant 0.000000e+00 : f32
    %233 = vector.shape_cast %40 : vector<1x256xi1> to vector<1x256xi1>
    %234 = vector.broadcast %233 : vector<1x256xi1> to vector<4x256xi1>
    %235 = vector.broadcast %cst_84 : f32 to vector<4x256xf32>
    %236 = arith.select %234, %232, %235 : vector<4x256xi1>, vector<4x256xf32>
    %237 = vector.extract_strided_slice %226 {offsets = [0, 2], sizes = [4, 256], strides = [1, 1]} : vector<4x290xf32> to vector<4x256xf32>
    %cst_85 = arith.constant 0.000000e+00 : f32
    %238 = vector.shape_cast %59 : vector<1x256xi1> to vector<1x256xi1>
    %239 = vector.broadcast %238 : vector<1x256xi1> to vector<4x256xi1>
    %240 = vector.broadcast %cst_85 : f32 to vector<4x256xf32>
    %241 = arith.select %239, %237, %240 : vector<4x256xi1>, vector<4x256xf32>
    %242 = vector.extract_strided_slice %226 {offsets = [0, 16], sizes = [4, 256], strides = [1, 1]} : vector<4x290xf32> to vector<4x256xf32>
    %cst_86 = arith.constant 0.000000e+00 : f32
    %243 = vector.shape_cast %78 : vector<1x256xi1> to vector<1x256xi1>
    %244 = vector.broadcast %243 : vector<1x256xi1> to vector<4x256xi1>
    %245 = vector.broadcast %cst_86 : f32 to vector<4x256xf32>
    %246 = arith.select %244, %242, %245 : vector<4x256xi1>, vector<4x256xf32>
    %247 = vector.extract_strided_slice %226 {offsets = [0, 17], sizes = [4, 256], strides = [1, 1]} : vector<4x290xf32> to vector<4x256xf32>
    %cst_87 = arith.constant 0.000000e+00 : f32
    %248 = vector.shape_cast %97 : vector<1x256xi1> to vector<1x256xi1>
    %249 = vector.broadcast %248 : vector<1x256xi1> to vector<4x256xi1>
    %250 = vector.broadcast %cst_87 : f32 to vector<4x256xf32>
    %251 = arith.select %249, %247, %250 : vector<4x256xi1>, vector<4x256xf32>
    %252 = vector.extract_strided_slice %226 {offsets = [0, 18], sizes = [4, 256], strides = [1, 1]} : vector<4x290xf32> to vector<4x256xf32>
    %cst_88 = arith.constant 0.000000e+00 : f32
    %253 = vector.shape_cast %116 : vector<1x256xi1> to vector<1x256xi1>
    %254 = vector.broadcast %253 : vector<1x256xi1> to vector<4x256xi1>
    %255 = vector.broadcast %cst_88 : f32 to vector<4x256xf32>
    %256 = arith.select %254, %252, %255 : vector<4x256xi1>, vector<4x256xf32>
    %257 = vector.extract_strided_slice %226 {offsets = [0, 32], sizes = [4, 256], strides = [1, 1]} : vector<4x290xf32> to vector<4x256xf32>
    %cst_89 = arith.constant 0.000000e+00 : f32
    %258 = vector.shape_cast %135 : vector<1x256xi1> to vector<1x256xi1>
    %259 = vector.broadcast %258 : vector<1x256xi1> to vector<4x256xi1>
    %260 = vector.broadcast %cst_89 : f32 to vector<4x256xf32>
    %261 = arith.select %259, %257, %260 : vector<4x256xi1>, vector<4x256xf32>
    %262 = vector.extract_strided_slice %226 {offsets = [0, 33], sizes = [4, 256], strides = [1, 1]} : vector<4x290xf32> to vector<4x256xf32>
    %cst_90 = arith.constant 0.000000e+00 : f32
    %263 = vector.shape_cast %154 : vector<1x256xi1> to vector<1x256xi1>
    %264 = vector.broadcast %263 : vector<1x256xi1> to vector<4x256xi1>
    %265 = vector.broadcast %cst_90 : f32 to vector<4x256xf32>
    %266 = arith.select %264, %262, %265 : vector<4x256xi1>, vector<4x256xf32>
    %267 = vector.extract_strided_slice %226 {offsets = [0, 34], sizes = [4, 256], strides = [1, 1]} : vector<4x290xf32> to vector<4x256xf32>
    %cst_91 = arith.constant 0.000000e+00 : f32
    %268 = vector.shape_cast %173 : vector<1x256xi1> to vector<1x256xi1>
    %269 = vector.broadcast %268 : vector<1x256xi1> to vector<4x256xi1>
    %270 = vector.broadcast %cst_91 : f32 to vector<4x256xf32>
    %271 = arith.select %269, %267, %270 : vector<4x256xi1>, vector<4x256xf32>
    %272 = tpu.concatenate %231, %236, %241, %246, %251, %256, %261, %266, %271 in 0 : vector<4x256xf32>, vector<4x256xf32>, vector<4x256xf32>, vector<4x256xf32>, vector<4x256xf32>, vector<4x256xf32>, vector<4x256xf32>, vector<4x256xf32>, vector<4x256xf32> -> vector<36x256xf32>
    %273 = tpu.concatenate %223, %272 in 1 : vector<36x256xf32>, vector<36x256xf32> -> vector<36x512xf32>
    %c0_92 = arith.constant 0 : index
    %c0_93 = arith.constant 0 : index
    %274 = vector.load %arg1[%c0_92, %c0_93] : memref<4x36xf32, #tpu.memory_space<vmem>>, vector<4x36xf32>
    %cst_94 = arith.constant dense<0.000000e+00> : vector<4x512xf32>
    %275 = tpu.matmul %274, %273, %cst_94 {dimension_numbers = #tpu.dot_dimension_numbers<[1], [0], [0], [1], [0, 0, 1, 1], [], []>} : vector<4x36xf32>, vector<36x512xf32>, vector<4x512xf32> -> vector<4x512xf32>
    %c0_95 = arith.constant 0 : index
    %c0_96 = arith.constant 0 : index
    %276 = vector.load %arg2[%c0_95, %c0_96] : memref<4x1xf32, #tpu.memory_space<vmem>>, vector<4x1xf32>
    %277 = vector.broadcast %276 : vector<4x1xf32> to vector<4x512xf32>
    %278 = arith.addf %275, %277 : vector<4x512xf32>
    %cst_97 = arith.constant dense<0.000000e+00> : vector<4xf32>
    %279 = vector.multi_reduction <add>, %278, %cst_97 [1] : vector<4x512xf32> to vector<4xf32>
    %280 = vector.shape_cast %279 : vector<4xf32> to vector<4x1xf32>
    %cst_98 = arith.constant 5.120000e+02 : f32
    %281 = vector.broadcast %cst_98 : f32 to vector<4x1xf32>
    %282 = arith.divf %280, %281 : vector<4x1xf32>
    %283 = vector.broadcast %282 : vector<4x1xf32> to vector<4x512xf32>
    %284 = arith.subf %278, %283 : vector<4x512xf32>
    %285 = arith.mulf %284, %284 : vector<4x512xf32>
    %cst_99 = arith.constant dense<0.000000e+00> : vector<4xf32>
    %286 = vector.multi_reduction <add>, %285, %cst_99 [1] : vector<4x512xf32> to vector<4xf32>
    %287 = vector.shape_cast %286 : vector<4xf32> to vector<4x1xf32>
    %cst_100 = arith.constant 5.120000e+02 : f32
    %288 = vector.broadcast %cst_100 : f32 to vector<4x1xf32>
    %289 = arith.divf %287, %288 : vector<4x1xf32>
    %cst_101 = arith.constant 9.99999974E-6 : f32
    %290 = vector.broadcast %cst_101 : f32 to vector<4x1xf32>
    %291 = arith.addf %289, %290 : vector<4x1xf32>
    %292 = math.rsqrt %291 : vector<4x1xf32>
    %293 = vector.broadcast %292 : vector<4x1xf32> to vector<4x512xf32>
    %294 = arith.mulf %284, %293 : vector<4x512xf32>
    %c0_102 = arith.constant 0 : index
    %c0_103 = arith.constant 0 : index
    %295 = vector.load %arg3[%c0_102, %c0_103] : memref<4x1xf32, #tpu.memory_space<vmem>>, vector<4x1xf32>
    %296 = vector.broadcast %295 : vector<4x1xf32> to vector<4x512xf32>
    %297 = arith.mulf %294, %296 : vector<4x512xf32>
    %c0_104 = arith.constant 0 : index
    %c0_105 = arith.constant 0 : index
    %298 = vector.load %arg4[%c0_104, %c0_105] : memref<4x1xf32, #tpu.memory_space<vmem>>, vector<4x1xf32>
    %299 = vector.broadcast %298 : vector<4x1xf32> to vector<4x512xf32>
    %300 = arith.addf %297, %299 : vector<4x512xf32>
    %c0_106 = arith.constant 0 : index
    %301 = memref.load %arg5[%c0_106] : memref<1xf32, #tpu.memory_space<smem>>
    %cst_107 = arith.constant 0.000000e+00 : f32
    %302 = vector.broadcast %cst_107 : f32 to vector<4x512xf32>
    %303 = arith.cmpf oge, %300, %302 : vector<4x512xf32>
    %304 = vector.broadcast %301 : f32 to vector<4x512xf32>
    %305 = arith.mulf %304, %300 : vector<4x512xf32>
    %306 = arith.select %303, %300, %305 : vector<4x512xi1>, vector<4x512xf32>
    %307 = vector.extract_strided_slice %306 {offsets = [0, 0], sizes = [4, 256], strides = [1, 1]} : vector<4x512xf32> to vector<4x256xf32>
    %c0_108 = arith.constant 0 : index
    %c0_109 = arith.constant 0 : index
    %c0_110 = arith.constant 0 : index
    %308 = vector.load %arg7[%c0_108, %c0_109, %c0_110] : memref<2x4x256xf32, #tpu.memory_space<vmem>>, vector<1x4x256xf32>
    %309 = vector.shape_cast %308 : vector<1x4x256xf32> to vector<4x256xf32>
    %310 = vector.shape_cast %307 : vector<4x256xf32> to vector<1x4x256xf32>
    tpu.vector_store %arg7[%c0_108, %c0_109, %c0_110], %310 {strides = array<i32>} : memref<2x4x256xf32, #tpu.memory_space<vmem>>, vector<1x4x256xf32>,
    %311 = vector.extract_strided_slice %306 {offsets = [0, 256], sizes = [4, 256], strides = [1, 1]} : vector<4x512xf32> to vector<4x256xf32>
    %c1_111 = arith.constant 1 : index
    %c0_112 = arith.constant 0 : index
    %c0_113 = arith.constant 0 : index
    %312 = vector.load %arg7[%c1_111, %c0_112, %c0_113] : memref<2x4x256xf32, #tpu.memory_space<vmem>>, vector<1x4x256xf32>
    %313 = vector.shape_cast %312 : vector<1x4x256xf32> to vector<4x256xf32>
    %314 = vector.shape_cast %311 : vector<4x256xf32> to vector<1x4x256xf32>
    tpu.vector_store %arg7[%c1_111, %c0_112, %c0_113], %314 {strides = array<i32>} : memref<2x4x256xf32, #tpu.memory_space<vmem>>, vector<1x4x256xf32>,
    return
  }
}

</mosaic_0001>

<llo_original>
// kernel: tile.9
$region0: #{tile.9}
  %s0 = inlined_call_operand.vmem [shape: s32[16,16], index: 0, kind: input, shape index: {}]
  %s1 = inlined_call_operand.vmem [shape: s32[1,256], index: 1, kind: output, shape index: {}]
  $region1: #{tile.9} parent=0
    #allocation0 [shape = 'u8[8192]{0}', space=vmem, size = 0x2000, scoped, tag = 'scoped mem for output reshape']
    %s2 = smov 3
    %v3 = vld [vmem:[%s0] ss:$8 sm:%s2]
    %vm4 = vcmask 130048
    %5 = vst.msk [vmem:[#allocation0] ss:$8 sm:$0x3] %vm4, %v3
    %s6 = scalar_lea.vmem %s0, 7
    %s7 = smov 3
    %v8 = vld [vmem:[%s6] ss:$8 sm:%s7]
    %9 = vrot.lane.b32.xlu0 %v8, 112
    %v10 = vpop.permute.xlu0 %9
    %vm11 = vcmask 1048448
    %12 = vst.msk [vmem:[#allocation0] ss:$8 sm:$0x3] %vm11, %v10
    %s13 = scalar_lea.vmem %s0, 6
    %s14 = smov 3
    %v15 = vld [vmem:[%s13] ss:$8 sm:%s14]
    %16 = vrot.lane.b32.xlu0 %v15, 96
    %v17 = vpop.permute.xlu0 %16
    %vm18 = vcmask 917248
    %19 = vst.msk [vmem:[#allocation0] ss:$8 sm:$0x3] %vm18, %v17
    %s20 = scalar_lea.vmem %s0, 5
    %s21 = smov 3
    %v22 = vld [vmem:[%s20] ss:$8 sm:%s21]
    %23 = vrot.lane.b32.xlu0 %v22, 80
    %v24 = vpop.permute.xlu0 %23
    %vm25 = vcmask 786048
    %26 = vst.msk [vmem:[#allocation0] ss:$8 sm:$0x3] %vm25, %v24
    %s27 = scalar_lea.vmem %s0, 4
    %s28 = smov 3
    %v29 = vld [vmem:[%s27] ss:$8 sm:%s28]
    %30 = vrot.lane.b32.xlu0 %v29, 64
    %v31 = vpop.permute.xlu0 %30
    %vm32 = vcmask 654848
    %33 = vst.msk [vmem:[#allocation0] ss:$8 sm:$0x3] %vm32, %v31
    %s34 = scalar_lea.vmem %s0, 3
    %s35 = smov 3
    %v36 = vld [vmem:[%s34] ss:$8 sm:%s35]
    %37 = vrot.lane.b32.xlu0 %v36, 48
    %v38 = vpop.permute.xlu0 %37
    %vm39 = vcmask 523648
    %40 = vst.msk [vmem:[#allocation0] ss:$8 sm:$0x3] %vm39, %v38
    %s41 = scalar_lea.vmem %s0, 2
    %s42 = smov 3
    %v43 = vld [vmem:[%s41] ss:$8 sm:%s42]
    %44 = vrot.lane.b32.xlu0 %v43, 32
    %v45 = vpop.permute.xlu0 %44
    %vm46 = vcmask 392448
    %47 = vst.msk [vmem:[#allocation0] ss:$8 sm:$0x3] %vm46, %v45
    %s48 = scalar_lea.vmem %s0, 1
    %s49 = smov 3
    %v50 = vld [vmem:[%s48] ss:$8 sm:%s49]
    %51 = vrot.lane.b32.xlu0 %v50, 16
    %v52 = vpop.permute.xlu0 %51
    %vm53 = vcmask 261248
    %54 = vst.msk [vmem:[#allocation0] ss:$8 sm:$0x3] %vm53, %v52
    %s56 = sshllo.u32 0, 1
    %v58 = vld [vmem:[#allocation0] sm:%s56]
    %s59 = sshllo.u32 0, 1
    %60 = vst [vmem:[%s1] sm:%s59] %v58
    %s61 = scalar_lea.vmem [#allocation0], 8
    %v62 = vld [vmem:[%s61] sm:%s56]
    %s63 = sshllo.u32 0, 1
    %s64 = scalar_lea.vmem %s1, 1
    %65 = vst [vmem:[%s64] sm:%s63] %v62

// kernel: conv_block_forward.1
$region0: #{conv_block_forward.1}
  #allocation0 [shape = 'u32[]', space=smem, size = 0x4, offset = 0x4, fixed_abs, tag = 'smem constant byte address 0x4 - core index']
  #allocation1 [shape = 'u32[144,128]{1,0:T(1,128)}', space=vmem, size = 0x12000, scoped, tag = 'internal scratch']
  #allocation2 [shape = 'f32[1]{0:T(128)S(6)}', space=smem, size = 0x200, scoped, tag = 'scoped memory for conv_block_forward.1']
  %s0 = inlined_call_operand.vmem [shape: f32[2,4,256], index: 0, kind: input, shape index: {}]
  %s1 = inlined_call_operand.vmem [shape: f32[4,36], index: 1, kind: input, shape index: {}]
  %s2 = inlined_call_operand.vmem [shape: f32[4,1], index: 2, kind: input, shape index: {}]
  %s3 = inlined_call_operand.vmem [shape: f32[4,1], index: 3, kind: input, shape index: {}]
  %s4 = inlined_call_operand.vmem [shape: f32[4,1], index: 4, kind: input, shape index: {}]
  %s5 = inlined_call_operand.<no memory space> [shape: f32[1], index: 5, kind: input, shape index: {}]
  %s6 = inlined_call_operand.vmem [shape: s32[2,256], index: 6, kind: input, shape index: {}]
  %s7 = inlined_call_operand.vmem [shape: f32[2,4,256], index: 7, kind: output, shape index: {}]
  %s8 = sld [smem:[#allocation0]]
  $region38: #{conv_block_forward.1} parent=0
    _
  %s10 = ssub.s32 1, %s8
  %s11 = scalar_select 0, %s10, %s8
  %12 = sst [smem:[#allocation2]] %s5
  // Predicated region
  $region2: #{conv_block_forward.1} parent=0 // pred_check
    _
  $region3: #{conv_block_forward.1} parent=0 // pred_check_branch
    %14 = sbr.rel (0) target = $region5
  $region4: #{conv_block_forward.1} parent=0 // pred_region
    _
  $region5: #{conv_block_forward.1} parent=0 // pred_fallthru
    _
  // Predicated region
  $region6: #{conv_block_forward.1} parent=0 // pred_check
    _
  $region7: #{conv_block_forward.1} parent=0 // pred_check_branch
    %16 = sbr.rel (0) target = $region9
  $region8: #{conv_block_forward.1} parent=0 // pred_region
    _
  $region9: #{conv_block_forward.1} parent=0 // pred_fallthru
    _
  // Predicated region
  $region10: #{conv_block_forward.1} parent=0 // pred_check
    _
  $region11: #{conv_block_forward.1} parent=0 // pred_check_branch
    %18 = sbr.rel (0) target = $region13
  $region12: #{conv_block_forward.1} parent=0 // pred_region
    _
  $region13: #{conv_block_forward.1} parent=0 // pred_fallthru
    _
  // Predicated region
  $region14: #{conv_block_forward.1} parent=0 // pred_check
    _
  $region15: #{conv_block_forward.1} parent=0 // pred_check_branch
    %20 = sbr.rel (0) target = $region17
  $region16: #{conv_block_forward.1} parent=0 // pred_region
    _
  $region17: #{conv_block_forward.1} parent=0 // pred_fallthru
    _
  // Predicated region
  $region18: #{conv_block_forward.1} parent=0 // pred_check
    _
  $region19: #{conv_block_forward.1} parent=0 // pred_check_branch
    %22 = sbr.rel (0) target = $region21
  $region20: #{conv_block_forward.1} parent=0 // pred_region
    _
  $region21: #{conv_block_forward.1} parent=0 // pred_fallthru
    _
  // Predicated region
  $region22: #{conv_block_forward.1} parent=0 // pred_check
    _
  $region23: #{conv_block_forward.1} parent=0 // pred_check_branch
    %24 = sbr.rel (0) target = $region25
  $region24: #{conv_block_forward.1} parent=0 // pred_region
    _
  $region25: #{conv_block_forward.1} parent=0 // pred_fallthru
    _
  // Predicated region
  $region26: #{conv_block_forward.1} parent=0 // pred_check
    _
  $region27: #{conv_block_forward.1} parent=0 // pred_check_branch
    %26 = sbr.rel (0) target = $region29
  $region28: #{conv_block_forward.1} parent=0 // pred_region
    _
  $region29: #{conv_block_forward.1} parent=0 // pred_fallthru
    _
  %v27 = vld [vmem:[%s6] sm:$0xf]
  %v28 = vadd.s32 %v27, 4294967295
  %vm29 = vcmp.ge.s32.totalorder %v28, 0
  %vm30 = vcmp.lt.s32.totalorder %v28, 16
  %vm31 = vmand %vm29, %vm30
  %v32 = vsel %vm29, 1, 0
  %v33 = vrot.slane %v32, 7
  %v34 = vrot.slane %v33, 2
  %vm35 = vcmp.ne.s32.totalorder %v34, 0
  %vm36 = vmand %vm31, %vm35
  %v37 = vsel %vm30, 1, 0
  %v38 = vrot.slane %v37, 7
  %v39 = vrot.slane %v38, 2
  %vm40 = vcmp.ne.s32.totalorder %v39, 0
  %vm41 = vmand %vm36, %vm40
  %vm42 = vcmp.ge.s32.totalorder %v27, 0
  %v43 = vsel %vm42, 1, 0
  %v44 = vrot.slane %v43, 7
  %v45 = vrot.slane %v44, 2
  %vm46 = vcmp.ne.s32.totalorder %v45, 0
  %vm47 = vmand %vm31, %vm46
  %vm48 = vcmp.lt.s32.totalorder %v27, 16
  %v49 = vsel %vm48, 1, 0
  %v50 = vrot.slane %v49, 7
  %v51 = vrot.slane %v50, 2
  %vm52 = vcmp.ne.s32.totalorder %v51, 0
  %vm53 = vmand %vm47, %vm52
  %v54 = vadd.s32 %v27, 1
  %vm55 = vcmp.ge.s32.totalorder %v54, 0
  %v56 = vsel %vm55, 1, 0
  %v57 = vrot.slane %v56, 7
  %v58 = vrot.slane %v57, 2
  %vm59 = vcmp.ne.s32.totalorder %v58, 0
  %vm60 = vmand %vm31, %vm59
  %vm61 = vcmp.lt.s32.totalorder %v54, 16
  %v62 = vsel %vm61, 1, 0
  %v63 = vrot.slane %v62, 7
  %v64 = vrot.slane %v63, 2
  %vm65 = vcmp.ne.s32.totalorder %v64, 0
  %vm66 = vmand %vm60, %vm65
  %vm67 = vmand %vm42, %vm48
  %vm68 = vmand %vm67, %vm35
  %vm69 = vmand %vm68, %vm40
  %vm70 = vmand %vm67, %vm46
  %vm71 = vmand %vm70, %vm52
  %vm72 = vmand %vm67, %vm59
  %vm73 = vmand %vm72, %vm65
  %vm74 = vmand %vm55, %vm61
  %vm75 = vmand %vm74, %vm35
  %vm76 = vmand %vm75, %vm40
  %vm77 = vmand %vm74, %vm46
  %vm78 = vmand %vm77, %vm52
  %vm79 = vmand %vm74, %vm59
  %vm80 = vmand %vm79, %vm65
  %v81 = vld [vmem:[%s0] sm:$0xff]
  %v83 = vcombine.high %v81, %v81
  %84 = vrot.lane.b32.xlu0 %v81, 17
  %v85 = vpop.permute.xlu0 %84
  %86 = vrot.lane.b32.xlu0 %v83, 17
  %v87 = vpop.permute.xlu0 %86
  %vm88 = vcmask 138240
  %v89 = vsel %vm88, %v85, %v87
  %v93 = vsel %vm88, 0.0, %v85
  %v94 = vsel %vm88, %v87, 0.0
  %v95 = vsel %vm41, 1, 0
  %v96 = vlaneseq
  %v97 = vshrl.u32 %v96, 7
  %v98 = vsub.s32 0, %v97
  %v99 = vrot.slane %v95, %v98
  %v100 = vlaneseq
  %v101 = vshrl.u32 %v100, 7
  %v102 = vsub.s32 2, %v101
  %v103 = vrot.slane %v95, %v102
  %v104 = vlaneseq
  %v105 = vshrl.u32 %v104, 7
  %v106 = vsub.s32 0, %v105
  %v107 = vrot.slane %v99, %v106
  %v108 = vlaneseq
  %v109 = vshrl.u32 %v108, 7
  %v110 = vsub.s32 0, %v109
  %v111 = vrot.slane %v103, %v110
  %vm112 = vcmp.eq.s32.totalorder %v107, 1
  %vm113 = vcmp.eq.s32.totalorder %v111, 1
  %v114 = vsel %vm112, %v93, 0.0
  %v115 = vsel %vm113, %v89, 0.0
  %v116 = vsel %vm53, 1, 0
  %v117 = vlaneseq
  %v118 = vshrl.u32 %v117, 7
  %v119 = vsub.s32 0, %v118
  %v120 = vrot.slane %v116, %v119
  %v121 = vlaneseq
  %v122 = vshrl.u32 %v121, 7
  %v123 = vsub.s32 2, %v122
  %v124 = vrot.slane %v116, %v123
  %v125 = vlaneseq
  %v126 = vshrl.u32 %v125, 7
  %v127 = vsub.s32 0, %v126
  %v128 = vrot.slane %v120, %v127
  %v129 = vlaneseq
  %v130 = vshrl.u32 %v129, 7
  %v131 = vsub.s32 0, %v130
  %v132 = vrot.slane %v124, %v131
  %vm133 = vcmp.eq.s32.totalorder %v128, 1
  %vm134 = vcmp.eq.s32.totalorder %v132, 1
  %137 = vrot.lane.b32.xlu0 %v93, 127
  %v138 = vpop.permute.xlu0 %137
  %139 = vrot.lane.b32.xlu0 %v89, 127
  %v140 = vpop.permute.xlu0 %139
  %141 = vrot.lane.b32.xlu0 %v94, 127
  %v142 = vpop.permute.xlu0 %141
  %vm143 = vcmask 1039360
  %v144 = vsel %vm143, %v138, %v140
  %v145 = vsel %vm143, %v140, %v142
  %v148 = vsel %vm133, %v144, 0.0
  %v149 = vsel %vm134, %v145, 0.0
  %v150 = vsel %vm66, 1, 0
  %v151 = vlaneseq
  %v152 = vshrl.u32 %v151, 7
  %v153 = vsub.s32 0, %v152
  %v154 = vrot.slane %v150, %v153
  %v155 = vlaneseq
  %v156 = vshrl.u32 %v155, 7
  %v157 = vsub.s32 2, %v156
  %v158 = vrot.slane %v150, %v157
  %v159 = vlaneseq
  %v160 = vshrl.u32 %v159, 7
  %v161 = vsub.s32 0, %v160
  %v162 = vrot.slane %v154, %v161
  %v163 = vlaneseq
  %v164 = vshrl.u32 %v163, 7
  %v165 = vsub.s32 0, %v164
  %v166 = vrot.slane %v158, %v165
  %vm167 = vcmp.eq.s32.totalorder %v162, 1
  %vm168 = vcmp.eq.s32.totalorder %v166, 1
  %169 = vrot.lane.b32.xlu0 %v93, 126
  %v170 = vpop.permute.xlu0 %169
  %171 = vrot.lane.b32.xlu0 %v89, 126
  %v172 = vpop.permute.xlu0 %171
  %173 = vrot.lane.b32.xlu0 %v94, 126
  %v174 = vpop.permute.xlu0 %173
  %vm175 = vcmask 1031168
  %v176 = vsel %vm175, %v170, %v172
  %v177 = vsel %vm175, %v172, %v174
  %v180 = vsel %vm167, %v176, 0.0
  %v181 = vsel %vm168, %v177, 0.0
  %v182 = vsel %vm69, 1, 0
  %v183 = vlaneseq
  %v184 = vshrl.u32 %v183, 7
  %v185 = vsub.s32 0, %v184
  %v186 = vrot.slane %v182, %v185
  %v187 = vlaneseq
  %v188 = vshrl.u32 %v187, 7
  %v189 = vsub.s32 2, %v188
  %v190 = vrot.slane %v182, %v189
  %v191 = vlaneseq
  %v192 = vshrl.u32 %v191, 7
  %v193 = vsub.s32 0, %v192
  %v194 = vrot.slane %v186, %v193
  %v195 = vlaneseq
  %v196 = vshrl.u32 %v195, 7
  %v197 = vsub.s32 0, %v196
  %v198 = vrot.slane %v190, %v197
  %vm199 = vcmp.eq.s32.totalorder %v194, 1
  %vm200 = vcmp.eq.s32.totalorder %v198, 1
  %201 = vrot.lane.b32.xlu0 %v93, 112
  %v202 = vpop.permute.xlu0 %201
  %203 = vrot.lane.b32.xlu0 %v89, 112
  %v204 = vpop.permute.xlu0 %203
  %205 = vrot.lane.b32.xlu0 %v94, 112
  %v206 = vpop.permute.xlu0 %205
  %vm207 = vcmask 916480
  %v208 = vsel %vm207, %v202, %v204
  %v209 = vsel %vm207, %v204, %v206
  %v212 = vsel %vm199, %v208, 0.0
  %v213 = vsel %vm200, %v209, 0.0
  %v214 = vsel %vm71, 1, 0
  %v215 = vlaneseq
  %v216 = vshrl.u32 %v215, 7
  %v217 = vsub.s32 0, %v216
  %v218 = vrot.slane %v214, %v217
  %v219 = vlaneseq
  %v220 = vshrl.u32 %v219, 7
  %v221 = vsub.s32 2, %v220
  %v222 = vrot.slane %v214, %v221
  %v223 = vlaneseq
  %v224 = vshrl.u32 %v223, 7
  %v225 = vsub.s32 0, %v224
  %v226 = vrot.slane %v218, %v225
  %v227 = vlaneseq
  %v228 = vshrl.u32 %v227, 7
  %v229 = vsub.s32 0, %v228
  %v230 = vrot.slane %v222, %v229
  %vm231 = vcmp.eq.s32.totalorder %v226, 1
  %vm232 = vcmp.eq.s32.totalorder %v230, 1
  %233 = vrot.lane.b32.xlu0 %v93, 111
  %v234 = vpop.permute.xlu0 %233
  %235 = vrot.lane.b32.xlu0 %v89, 111
  %v236 = vpop.permute.xlu0 %235
  %237 = vrot.lane.b32.xlu0 %v94, 111
  %v238 = vpop.permute.xlu0 %237
  %vm239 = vcmask 908288
  %v240 = vsel %vm239, %v234, %v236
  %v241 = vsel %vm239, %v236, %v238
  %v244 = vsel %vm231, %v240, 0.0
  %v245 = vsel %vm232, %v241, 0.0
  %v246 = vsel %vm73, 1, 0
  %v247 = vlaneseq
  %v248 = vshrl.u32 %v247, 7
  %v249 = vsub.s32 0, %v248
  %v250 = vrot.slane %v246, %v249
  %v251 = vlaneseq
  %v252 = vshrl.u32 %v251, 7
  %v253 = vsub.s32 2, %v252
  %v254 = vrot.slane %v246, %v253
  %v255 = vlaneseq
  %v256 = vshrl.u32 %v255, 7
  %v257 = vsub.s32 0, %v256
  %v258 = vrot.slane %v250, %v257
  %v259 = vlaneseq
  %v260 = vshrl.u32 %v259, 7
  %v261 = vsub.s32 0, %v260
  %v262 = vrot.slane %v254, %v261
  %vm263 = vcmp.eq.s32.totalorder %v258, 1
  %vm264 = vcmp.eq.s32.totalorder %v262, 1
  %265 = vrot.lane.b32.xlu0 %v93, 110
  %v266 = vpop.permute.xlu0 %265
  %267 = vrot.lane.b32.xlu0 %v89, 110
  %v268 = vpop.permute.xlu0 %267
  %269 = vrot.lane.b32.xlu0 %v94, 110
  %v270 = vpop.permute.xlu0 %269
  %vm271 = vcmask 900096
  %v272 = vsel %vm271, %v266, %v268
  %v273 = vsel %vm271, %v268, %v270
  %v276 = vsel %vm263, %v272, 0.0
  %v277 = vsel %vm264, %v273, 0.0
  %v278 = vsel %vm76, 1, 0
  %v279 = vlaneseq
  %v280 = vshrl.u32 %v279, 7
  %v281 = vsub.s32 0, %v280
  %v282 = vrot.slane %v278, %v281
  %v283 = vlaneseq
  %v284 = vshrl.u32 %v283, 7
  %v285 = vsub.s32 2, %v284
  %v286 = vrot.slane %v278, %v285
  %v287 = vlaneseq
  %v288 = vshrl.u32 %v287, 7
  %v289 = vsub.s32 0, %v288
  %v290 = vrot.slane %v282, %v289
  %v291 = vlaneseq
  %v292 = vshrl.u32 %v291, 7
  %v293 = vsub.s32 0, %v292
  %v294 = vrot.slane %v286, %v293
  %vm295 = vcmp.eq.s32.totalorder %v290, 1
  %vm296 = vcmp.eq.s32.totalorder %v294, 1
  %297 = vrot.lane.b32.xlu0 %v93, 96
  %v298 = vpop.permute.xlu0 %297
  %299 = vrot.lane.b32.xlu0 %v89, 96
  %v300 = vpop.permute.xlu0 %299
  %301 = vrot.lane.b32.xlu0 %v94, 96
  %v302 = vpop.permute.xlu0 %301
  %vm303 = vcmask 785408
  %v304 = vsel %vm303, %v298, %v300
  %v305 = vsel %vm303, %v300, %v302
  %v308 = vsel %vm295, %v304, 0.0
  %v309 = vsel %vm296, %v305, 0.0
  %v310 = vsel %vm78, 1, 0
  %v311 = vlaneseq
  %v312 = vshrl.u32 %v311, 7
  %v313 = vsub.s32 0, %v312
  %v314 = vrot.slane %v310, %v313
  %v315 = vlaneseq
  %v316 = vshrl.u32 %v315, 7
  %v317 = vsub.s32 2, %v316
  %v318 = vrot.slane %v310, %v317
  %v319 = vlaneseq
  %v320 = vshrl.u32 %v319, 7
  %v321 = vsub.s32 0, %v320
  %v322 = vrot.slane %v314, %v321
  %v323 = vlaneseq
  %v324 = vshrl.u32 %v323, 7
  %v325 = vsub.s32 0, %v324
  %v326 = vrot.slane %v318, %v325
  %vm327 = vcmp.eq.s32.totalorder %v322, 1
  %vm328 = vcmp.eq.s32.totalorder %v326, 1
  %329 = vrot.lane.b32.xlu0 %v93, 95
  %v330 = vpop.permute.xlu0 %329
  %331 = vrot.lane.b32.xlu0 %v89, 95
  %v332 = vpop.permute.xlu0 %331
  %333 = vrot.lane.b32.xlu0 %v94, 95
  %v334 = vpop.permute.xlu0 %333
  %vm335 = vcmask 777216
  %v336 = vsel %vm335, %v330, %v332
  %v337 = vsel %vm335, %v332, %v334
  %v340 = vsel %vm327, %v336, 0.0
  %v341 = vsel %vm328, %v337, 0.0
  %v342 = vsel %vm80, 1, 0
  %v343 = vlaneseq
  %v344 = vshrl.u32 %v343, 7
  %v345 = vsub.s32 0, %v344
  %v346 = vrot.slane %v342, %v345
  %v347 = vlaneseq
  %v348 = vshrl.u32 %v347, 7
  %v349 = vsub.s32 2, %v348
  %v350 = vrot.slane %v342, %v349
  %v351 = vlaneseq
  %v352 = vshrl.u32 %v351, 7
  %v353 = vsub.s32 0, %v352
  %v354 = vrot.slane %v346, %v353
  %v355 = vlaneseq
  %v356 = vshrl.u32 %v355, 7
  %v357 = vsub.s32 0, %v356
  %v358 = vrot.slane %v350, %v357
  %vm359 = vcmp.eq.s32.totalorder %v354, 1
  %vm360 = vcmp.eq.s32.totalorder %v358, 1
  %361 = vrot.lane.b32.xlu0 %v93, 94
  %v362 = vpop.permute.xlu0 %361
  %363 = vrot.lane.b32.xlu0 %v89, 94
  %v364 = vpop.permute.xlu0 %363
  %365 = vrot.lane.b32.xlu0 %v94, 94
  %v366 = vpop.permute.xlu0 %365
  %vm367 = vcmask 769024
  %v368 = vsel %vm367, %v362, %v364
  %v369 = vsel %vm367, %v364, %v366
  %v372 = vsel %vm359, %v368, 0.0
  %v373 = vsel %vm360, %v369, 0.0
  %v376 = vrot.slane %v148, 4
  %v377 = vrot.slane %v149, 4
  %v382 = vrot.slane %v212, 4
  %v383 = vrot.slane %v213, 4
  %v388 = vrot.slane %v276, 4
  %v389 = vrot.slane %v277, 4
  %v394 = vrot.slane %v340, 4
  %v395 = vrot.slane %v341, 4
  %vm398 = vcmask 1043456
  %v399 = vsel %vm398, %v114, %v376
  %v400 = vsel %vm398, %v115, %v377
  %v401 = vsel %vm398, %v180, %v382
  %v402 = vsel %vm398, %v181, %v383
  %v403 = vsel %vm398, %v244, %v388
  %v404 = vsel %vm398, %v245, %v389
  %v405 = vsel %vm398, %v308, %v394
  %v406 = vsel %vm398, %v309, %v395
  %s407 = scalar_lea.vmem %s0, 8
  %v408 = vld [vmem:[%s407] sm:$0xff]
  %v410 = vcombine.high %v408, %v408
  %411 = vrot.lane.b32.xlu0 %v408, 17
  %v412 = vpop.permute.xlu0 %411
  %413 = vrot.lane.b32.xlu0 %v410, 17
  %v414 = vpop.permute.xlu0 %413
  %v415 = vsel %vm88, %v412, %v414
  %v419 = vsel %vm88, 0.0, %v412
  %v420 = vsel %vm88, %v414, 0.0
  %v421 = vsel %vm112, %v419, 0.0
  %v422 = vsel %vm113, %v415, 0.0
  %425 = vrot.lane.b32.xlu0 %v419, 127
  %v426 = vpop.permute.xlu0 %425
  %427 = vrot.lane.b32.xlu0 %v415, 127
  %v428 = vpop.permute.xlu0 %427
  %429 = vrot.lane.b32.xlu0 %v420, 127
  %v430 = vpop.permute.xlu0 %429
  %v431 = vsel %vm143, %v426, %v428
  %v432 = vsel %vm143, %v428, %v430
  %v435 = vsel %vm133, %v431, 0.0
  %v436 = vsel %vm134, %v432, 0.0
  %437 = vrot.lane.b32.xlu0 %v419, 126
  %v438 = vpop.permute.xlu0 %437
  %439 = vrot.lane.b32.xlu0 %v415, 126
  %v440 = vpop.permute.xlu0 %439
  %441 = vrot.lane.b32.xlu0 %v420, 126
  %v442 = vpop.permute.xlu0 %441
  %v443 = vsel %vm175, %v438, %v440
  %v444 = vsel %vm175, %v440, %v442
  %v447 = vsel %vm167, %v443, 0.0
  %v448 = vsel %vm168, %v444, 0.0
  %449 = vrot.lane.b32.xlu0 %v419, 112
  %v450 = vpop.permute.xlu0 %449
  %451 = vrot.lane.b32.xlu0 %v415, 112
  %v452 = vpop.permute.xlu0 %451
  %453 = vrot.lane.b32.xlu0 %v420, 112
  %v454 = vpop.permute.xlu0 %453
  %v455 = vsel %vm207, %v450, %v452
  %v456 = vsel %vm207, %v452, %v454
  %v459 = vsel %vm199, %v455, 0.0
  %v460 = vsel %vm200, %v456, 0.0
  %461 = vrot.lane.b32.xlu0 %v419, 111
  %v462 = vpop.permute.xlu0 %461
  %463 = vrot.lane.b32.xlu0 %v415, 111
  %v464 = vpop.permute.xlu0 %463
  %465 = vrot.lane.b32.xlu0 %v420, 111
  %v466 = vpop.permute.xlu0 %465
  %v467 = vsel %vm239, %v462, %v464
  %v468 = vsel %vm239, %v464, %v466
  %v471 = vsel %vm231, %v467, 0.0
  %v472 = vsel %vm232, %v468, 0.0
  %473 = vrot.lane.b32.xlu0 %v419, 110
  %v474 = vpop.permute.xlu0 %473
  %475 = vrot.lane.b32.xlu0 %v415, 110
  %v476 = vpop.permute.xlu0 %475
  %477 = vrot.lane.b32.xlu0 %v420, 110
  %v478 = vpop.permute.xlu0 %477
  %v479 = vsel %vm271, %v474, %v476
  %v480 = vsel %vm271, %v476, %v478
  %v483 = vsel %vm263, %v479, 0.0
  %v484 = vsel %vm264, %v480, 0.0
  %485 = vrot.lane.b32.xlu0 %v419, 96
  %v486 = vpop.permute.xlu0 %485
  %487 = vrot.lane.b32.xlu0 %v415, 96
  %v488 = vpop.permute.xlu0 %487
  %489 = vrot.lane.b32.xlu0 %v420, 96
  %v490 = vpop.permute.xlu0 %489
  %v491 = vsel %vm303, %v486, %v488
  %v492 = vsel %vm303, %v488, %v490
  %v495 = vsel %vm295, %v491, 0.0
  %v496 = vsel %vm296, %v492, 0.0
  %497 = vrot.lane.b32.xlu0 %v419, 95
  %v498 = vpop.permute.xlu0 %497
  %499 = vrot.lane.b32.xlu0 %v415, 95
  %v500 = vpop.permute.xlu0 %499
  %501 = vrot.lane.b32.xlu0 %v420, 95
  %v502 = vpop.permute.xlu0 %501
  %v503 = vsel %vm335, %v498, %v500
  %v504 = vsel %vm335, %v500, %v502
  %v507 = vsel %vm327, %v503, 0.0
  %v508 = vsel %vm328, %v504, 0.0
  %509 = vrot.lane.b32.xlu0 %v419, 94
  %v510 = vpop.permute.xlu0 %509
  %511 = vrot.lane.b32.xlu0 %v415, 94
  %v512 = vpop.permute.xlu0 %511
  %513 = vrot.lane.b32.xlu0 %v420, 94
  %v514 = vpop.permute.xlu0 %513
  %v515 = vsel %vm367, %v510, %v512
  %v516 = vsel %vm367, %v512, %v514
  %v519 = vsel %vm359, %v515, 0.0
  %v520 = vsel %vm360, %v516, 0.0
  %v523 = vrot.slane %v435, 4
  %v524 = vrot.slane %v436, 4
  %v529 = vrot.slane %v459, 4
  %v530 = vrot.slane %v460, 4
  %v535 = vrot.slane %v483, 4
  %v536 = vrot.slane %v484, 4
  %v541 = vrot.slane %v507, 4
  %v542 = vrot.slane %v508, 4
  %v545 = vsel %vm398, %v421, %v523
  %v546 = vsel %vm398, %v422, %v524
  %v547 = vsel %vm398, %v447, %v529
  %v548 = vsel %vm398, %v448, %v530
  %v549 = vsel %vm398, %v471, %v535
  %v550 = vsel %vm398, %v472, %v536
  %v551 = vsel %vm398, %v495, %v541
  %v552 = vsel %vm398, %v496, %v542
  %v553 = vld [vmem:[%s1] sm:$0xf]
  %v554 = vld [vmem:[%s2] sm:$0xf]
  %556 = vset.pattern.permute.xlu0 0
  %557 = vperm.xlu0 %556, %v554
  %v558 = vpop.permute.xlu0 %557
  %vm560 = vcmask 293888
  %v562 = vsel %vm560, %v553, 0
  %v565 = vsel %vm398, %v372, 0
  %v568 = vsel %vm398, %v373, 0
  %v571 = vsel %vm398, %v519, 0
  %v574 = vsel %vm398, %v520, 0
  %576 = vmatprep.subr.mxu0 %v400
  %577 = vmatpush1.msra.mxu0 %v399
  %578 = vmatprep.subr.mxu0 %v402
  %579 = vmatpush1.msra.mxu0 %v401
  %580 = vmatprep.subr.mxu0 %v404
  %581 = vmatpush1.msra.mxu0 %v403
  %582 = vmatprep.subr.mxu0 %v406
  %583 = vmatpush1.msra.mxu0 %v405
  %584 = vmatprep.subr.mxu0 %v568
  %585 = vmatpush1.msra.mxu0 %v565
  %586 = vmatprep.subr.mxu0 0.0
  %587 = vmatpush1.msra.mxu0 0.0
  %588 = vmatprep.subr.mxu0 0.0
  %589 = vmatpush1.msra.mxu0 0.0
  %590 = vmatprep.subr.mxu0 0.0
  %591 = vmatpush1.msra.mxu0 0.0
  %592 = vmatprep.subr.mxu0 0.0
  %593 = vmatpush1.msra.mxu0 0.0
  %594 = vmatprep.subr.mxu0 0.0
  %595 = vmatpush1.msra.mxu0 0.0
  %596 = vmatprep.subr.mxu0 0.0
  %597 = vmatpush1.msra.mxu0 0.0
  %598 = vmatprep.subr.mxu0 0.0
  %599 = vmatpush1.msra.mxu0 0.0
  %600 = vmatprep.subr.mxu0 0.0
  %601 = vmatpush1.msra.mxu0 0.0
  %602 = vmatprep.subr.mxu0 0.0
  %603 = vmatpush1.msra.mxu0 0.0
  %604 = vmatprep.subr.mxu0 0.0
  %605 = vmatpush1.msra.mxu0 0.0
  %606 = vmatprep.subr.mxu0 0.0
  %607 = vmatpush1.msra.mxu0 0.0
  %608 = vmatprep.subr.mxu0 0.0
  %609 = vmatpush1.msra.mxu0 0.0
  %610 = vmatprep.subr.mxu0 0.0
  %611 = vmatpush1.msra.mxu0 0.0
  %612 = vmatprep.subr.mxu0 0.0
  %613 = vmatpush1.msra.mxu0 0.0
  %614 = vmatprep.subr.mxu0 0.0
  %615 = vmatpush1.msra.mxu0 0.0
  %616 = vmatprep.subr.mxu0 0.0
  %617 = vmatpush1.msra.mxu0 0.0
  %618 = vmatprep.subr.mxu0 0.0
  %619 = vmatpush1.msra.mxu0 0.0
  %620 = vmatprep.subr.mxu0 0.0
  %621 = vmatpush1.msra.mxu0 0.0
  %622 = vmatprep.subr.mxu0 0.0
  %623 = vmatpush1.msra.mxu0 0.0
  %624 = vmatprep.subr.mxu0 0.0
  %625 = vmatpush1.msra.mxu0 0.0
  %626 = vmatprep.subr.mxu0 0.0
  %627 = vmatpush1.msra.mxu0 0.0
  %628 = vmatprep.subr.mxu0 0.0
  %629 = vmatpush1.msra.mxu0 0.0
  %630 = vmatprep.subr.mxu0 0.0
  %631 = vmatpush1.msra.mxu0 0.0
  %632 = vmatprep.subr.mxu0 0.0
  %633 = vmatpush1.msra.mxu0 0.0
  %634 = vmatprep.subr.mxu0 0.0
  %635 = vmatpush1.msra.mxu0 0.0
  %636 = vmatprep.subr.mxu0 0.0
  %637 = vmatpush1.msra.mxu0 0.0
  %638 = vmatprep.subr.mxu0 0.0
  %639 = vmatpush1.msra.mxu0 0.0
  %640 = vmatprep.mubr.f32.mxu0 0.0
  %641 = vmatmul.mubr.f32.gmra.mrb[0].mxu0 %v562
  %v642 = vpop.f32.mrb[0].mxu0
  %v643 = vadd.f32 %v558, %v642
  %v644 = vpop.f32.mrb[0].mxu0
  %v645 = vadd.f32 %v558, %v644
  %646 = vdwg.mxu0
  %647 = vmatprep.subr.mxu0 %v546
  %648 = vmatpush1.msra.mxu0 %v545
  %649 = vmatprep.subr.mxu0 %v548
  %650 = vmatpush1.msra.mxu0 %v547
  %651 = vmatprep.subr.mxu0 %v550
  %652 = vmatpush1.msra.mxu0 %v549
  %653 = vmatprep.subr.mxu0 %v552
  %654 = vmatpush1.msra.mxu0 %v551
  %655 = vmatprep.subr.mxu0 %v574
  %656 = vmatpush1.msra.mxu0 %v571
  %657 = vmatprep.subr.mxu0 0.0
  %658 = vmatpush1.msra.mxu0 0.0
  %659 = vmatprep.subr.mxu0 0.0
  %660 = vmatpush1.msra.mxu0 0.0
  %661 = vmatprep.subr.mxu0 0.0
  %662 = vmatpush1.msra.mxu0 0.0
  %663 = vmatprep.subr.mxu0 0.0
  %664 = vmatpush1.msra.mxu0 0.0
  %665 = vmatprep.subr.mxu0 0.0
  %666 = vmatpush1.msra.mxu0 0.0
  %667 = vmatprep.subr.mxu0 0.0
  %668 = vmatpush1.msra.mxu0 0.0
  %669 = vmatprep.subr.mxu0 0.0
  %670 = vmatpush1.msra.mxu0 0.0
  %671 = vmatprep.subr.mxu0 0.0
  %672 = vmatpush1.msra.mxu0 0.0
  %673 = vmatprep.subr.mxu0 0.0
  %674 = vmatpush1.msra.mxu0 0.0
  %675 = vmatprep.subr.mxu0 0.0
  %676 = vmatpush1.msra.mxu0 0.0
  %677 = vmatprep.subr.mxu0 0.0
  %678 = vmatpush1.msra.mxu0 0.0
  %679 = vmatprep.subr.mxu0 0.0
  %680 = vmatpush1.msra.mxu0 0.0
  %681 = vmatprep.subr.mxu0 0.0
  %682 = vmatpush1.msra.mxu0 0.0
  %683 = vmatprep.subr.mxu0 0.0
  %684 = vmatpush1.msra.mxu0 0.0
  %685 = vmatprep.subr.mxu0 0.0
  %686 = vmatpush1.msra.mxu0 0.0
  %687 = vmatprep.subr.mxu0 0.0
  %688 = vmatpush1.msra.mxu0 0.0
  %689 = vmatprep.subr.mxu0 0.0
  %690 = vmatpush1.msra.mxu0 0.0
  %691 = vmatprep.subr.mxu0 0.0
  %692 = vmatpush1.msra.mxu0 0.0
  %693 = vmatprep.subr.mxu0 0.0
  %694 = vmatpush1.msra.mxu0 0.0
  %695 = vmatprep.subr.mxu0 0.0
  %696 = vmatpush1.msra.mxu0 0.0
  %697 = vmatprep.subr.mxu0 0.0
  %698 = vmatpush1.msra.mxu0 0.0
  %699 = vmatprep.subr.mxu0 0.0
  %700 = vmatpush1.msra.mxu0 0.0
  %701 = vmatprep.subr.mxu0 0.0
  %702 = vmatpush1.msra.mxu0 0.0
  %703 = vmatprep.subr.mxu0 0.0
  %704 = vmatpush1.msra.mxu0 0.0
  %705 = vmatprep.subr.mxu0 0.0
  %706 = vmatpush1.msra.mxu0 0.0
  %707 = vmatprep.subr.mxu0 0.0
  %708 = vmatpush1.msra.mxu0 0.0
  %709 = vmatprep.subr.mxu0 0.0
  %710 = vmatpush1.msra.mxu0 0.0
  %711 = vmatprep.mubr.f32.mxu0 0.0
  %712 = vmatmul.mubr.f32.gmra.mrb[0].mxu0 %v562
  %v713 = vpop.f32.mrb[0].mxu0
  %v714 = vadd.f32 %v558, %v713
  %v715 = vpop.f32.mrb[0].mxu0
  %v716 = vadd.f32 %v558, %v715
  %717 = vdwg.mxu0
  %v718 = vsel %vm398, %v643, 0.0
  %v719 = vsel %vm398, %v645, 0.0
  %v720 = vadd.f32 %v718, %v719
  %v721 = vsel %vm398, %v714, 0.0
  %v722 = vadd.f32 %v720, %v721
  %v723 = vsel %vm398, %v716, 0.0
  %v724 = vadd.f32 %v722, %v723
  %725 = vadd.xlane.f32.xlu0 %v724
  %v726 = vpop.xlane.xlu0 %725
  %v727 = vrcp.pop 512.0
  %v728 = vmul.f32 %v726, %v727
  %v729 = vsub.f32 %v643, %v728
  %v730 = vsub.f32 %v645, %v728
  %v731 = vsub.f32 %v714, %v728
  %v732 = vsub.f32 %v716, %v728
  %v733 = vmul.f32 %v729, %v729
  %v734 = vmul.f32 %v730, %v730
  %v735 = vmul.f32 %v731, %v731
  %v736 = vmul.f32 %v732, %v732
  %v737 = vsel %vm398, %v733, 0.0
  %v738 = vsel %vm398, %v734, 0.0
  %v739 = vadd.f32 %v737, %v738
  %v740 = vsel %vm398, %v735, 0.0
  %v741 = vadd.f32 %v739, %v740
  %v742 = vsel %vm398, %v736, 0.0
  %v743 = vadd.f32 %v741, %v742
  %744 = vadd.xlane.f32.xlu0 %v743
  %v745 = vpop.xlane.xlu0 %744
  %v746 = vmul.f32 %v745, %v727
  %v747 = vadd.f32 %v746, 1e-05
  %v748 = vrsqrt.pop %v747
  %v749 = vmul.f32 %v729, %v748
  %v750 = vmul.f32 %v730, %v748
  %v751 = vmul.f32 %v731, %v748
  %v752 = vmul.f32 %v732, %v748
  %v753 = vld [vmem:[%s3] sm:$0xf]
  %755 = vset.pattern.permute.xlu0 0
  %756 = vperm.xlu0 %755, %v753
  %v757 = vpop.permute.xlu0 %756
  %v759 = vmul.f32 %v749, %v757
  %v760 = vmul.f32 %v750, %v757
  %v761 = vmul.f32 %v751, %v757
  %v762 = vmul.f32 %v752, %v757
  %v763 = vld [vmem:[%s4] sm:$0xf]
  %765 = vset.pattern.permute.xlu0 0
  %766 = vperm.xlu0 %765, %v763
  %v767 = vpop.permute.xlu0 %766
  %v769 = vadd.f32 %v759, %v767
  %v770 = vadd.f32 %v760, %v767
  %v771 = vadd.f32 %v761, %v767
  %v772 = vadd.f32 %v762, %v767
  %s773 = sld [smem:[#allocation2]]
  %vm774 = vcmp.ge.f32.partialorder %v769, 0.0
  %vm775 = vcmp.ge.f32.partialorder %v770, 0.0
  %vm776 = vcmp.ge.f32.partialorder %v771, 0.0
  %vm777 = vcmp.ge.f32.partialorder %v772, 0.0
  %v778 = vstv %s773
  %v779 = vmul.f32 %v778, %v769
  %v780 = vmul.f32 %v778, %v770
  %v781 = vmul.f32 %v778, %v771
  %v782 = vmul.f32 %v778, %v772
  %v783 = vsel %vm774, %v769, %v779
  %v784 = vsel %vm775, %v770, %v780
  %v785 = vsel %vm776, %v771, %v781
  %v786 = vsel %vm777, %v772, %v782
  %v789 = vcombine.low %v783, %v784
  %791 = vst [vmem:[%s7] sm:$0xff] %v789
  %v794 = vcombine.low %v785, %v786
  %s796 = scalar_lea.vmem %s7, 8
  %797 = vst [vmem:[%s796] sm:$0xff] %v794
  // Predicated region
  $region30: #{conv_block_forward.1} parent=0 // pred_check
    _
  $region31: #{conv_block_forward.1} parent=0 // pred_check_branch
    %799 = sbr.rel (0) target = $region33
  $region32: #{conv_block_forward.1} parent=0 // pred_region
    _
  $region33: #{conv_block_forward.1} parent=0 // pred_fallthru
    _
  // Predicated region
  $region34: #{conv_block_forward.1} parent=0 // pred_check
    _
  $region35: #{conv_block_forward.1} parent=0 // pred_check_branch
    %801 = sbr.rel (0) target = $region37
  $region36: #{conv_block_forward.1} parent=0 // pred_region
    _
  $region37: #{conv_block_forward.1} parent=0 // pred_fallthru
    _

</llo_original>
